<compile_context>
chip_gen: v7x
topology: tpu7x:2x2x1
jax: 0.10.0
libtpu: 0.0.40
codegen_flags: <defaults>
</compile_context>

<pallas_src>
import functools

import jax
import jax.numpy as jnp
from jax.experimental import pallas as pl
from jax.experimental.pallas import tpu as pltpu


def xbarray_kernel(x_ref, state_ref, lap_ref, out_ref, mus_ref, stds_ref, acc_ref,
                   *, offset, inv_scale, n_samples, n_devices, tile_o):
    # x_ref:    (B, tI)          float32
    # state_ref:(N, tI, tO)      float32   memristor conductance states
    # lap_ref:  (S, N, tI, tO)   float32   standard Laplace draws (loc=0, scale=1)
    # out_ref:  (S, B, tO)       resident across the I (reduction) grid axis
    # mus_ref/stds_ref: (tI, tO)
    # acc_ref:  (B, S*tO) f32 VMEM scratch (matmul accumulator over I tiles)
    S, N = n_samples, n_devices
    ii = pl.program_id(1)

    @pl.when(ii == 0)
    def _init():
        acc_ref[...] = jnp.zeros_like(acc_ref)

    state = state_ref[...]                                        # (N, tI, tO)
    # read-noise scale polynomial (elementwise, VPU)
    read_scale = -0.0058 * state * state + 0.0324 * state + 0.0141
    state_sum = jnp.sum(state, axis=0)                            # (tI, tO)

    # Per-sample read sums without materializing the (S, N, tI, tO) broadcast:
    #   read_sum[s] = sum_n(state[n]) + sum_n(read_scale[n] * lap[s, n])
    read_sums = []
    for s in range(S):
        noise = read_scale[0] * lap_ref[s, 0]
        for n in range(1, N):
            noise = noise + read_scale[n] * lap_ref[s, n]
        read_sums.append(state_sum + noise)                       # (tI, tO)

    # sample statistics over S (torch.std default: unbiased, ddof=1)
    total = read_sums[0]
    for s in range(1, S):
        total = total + read_sums[s]
    mean = total * (1.0 / S)
    if S > 1:
        ssq = None
        for rs in read_sums:
            d = rs - mean
            ssq = d * d if ssq is None else ssq + d * d
        std = jnp.sqrt(ssq * (1.0 / (S - 1)))                     # EUP sqrt
    else:
        std = jnp.full_like(mean, jnp.nan)   # torch.std of a single sample is NaN

    mus_ref[...] = (mean - offset) * inv_scale
    stds_ref[...] = std * inv_scale

    # One lane-dense MXU matmul instead of S tiny ones:
    # weight columns for all S samples concatenated along the lane axis.
    w_cat = jnp.concatenate(
        [(rs - offset) * inv_scale for rs in read_sums], axis=-1)  # (tI, S*tO)
    acc_ref[...] += jnp.dot(x_ref[...], w_cat, preferred_element_type=jnp.float32)

    @pl.when(ii == pl.num_programs(1) - 1)
    def _finalize():
        for s in range(S):                                         # S is small & static
            out_ref[s] = acc_ref[:, s * tile_o:(s + 1) * tile_o].astype(out_ref.dtype)


def _pick_tile(full, target, align):
    """Largest tile <= target that evenly divides `full` and is a multiple of `align`;
    falls back to the full dimension (always a legal BlockSpec size)."""
    if full <= target:
        return full
    t = (min(target, full) // align) * align
    while t >= align:
        if full % t == 0:
            return t
        t -= align
    return full


def xbarray_forward(x, current_state, std_laplace, *, offset=7.2, scale=1.0,
                    target_ti=256, target_to=256):
    """x: (B, I); current_state: (I, O, N) [PyTorch parameter layout];
    std_laplace: (S, N, I, O) standard Laplace draws (loc=0, scale=1), already in
    kernel-native layout so the dominant array needs no wrapper transpose.
    Returns (output (S,B,O), weight_mus (I,O), weight_stds (I,O), ave_fly_time)."""
    B, I = x.shape
    I2, O, N = current_state.shape
    S, N2, I3, O2 = std_laplace.shape
    assert I == I2 == I3 and O == O2 and N == N2

    # glue: only the small (I, O, N) parameter is transposed (1/S of the lap traffic).
    state_nio = jnp.transpose(current_state, (2, 0, 1)).astype(jnp.float32)  # (N, I, O)

    # Tile sizes: lane-dim tiles must be multiples of 128 or the full dim; targets are
    # sized so double-buffered lap/state tiles stay well inside the default scoped VMEM
    # budget on v5e/v6e and the smaller 64 MiB VMEM of v7x.
    tI = _pick_tile(I, target_ti, 128)
    tO = _pick_tile(O, target_to, 128)
    grid = (O // tO, I // tI)   # O tiles: parallel (2 TCs on v7x); I tiles: reduction, last

    kernel = functools.partial(
        xbarray_kernel, offset=float(offset), inv_scale=1.0 / float(scale),
        n_samples=S, n_devices=N, tile_o=tO)

    out_shapes = (
        jax.ShapeDtypeStruct((S, B, O), jnp.float32),   # output
        jax.ShapeDtypeStruct((I, O), jnp.float32),      # weight_mus
        jax.ShapeDtypeStruct((I, O), jnp.float32),      # weight_stds
    )
    grid_spec = pltpu.PrefetchScalarGridSpec(
        num_scalar_prefetch=0,
        grid=grid,
        in_specs=[
            pl.BlockSpec((B, tI), lambda oi, ii: (0, ii)),               # x
            pl.BlockSpec((N, tI, tO), lambda oi, ii: (0, ii, oi)),       # state (N,I,O)
            pl.BlockSpec((S, N, tI, tO), lambda oi, ii: (0, 0, ii, oi)), # laplace draws
        ],
        out_specs=(
            pl.BlockSpec((S, B, tO), lambda oi, ii: (0, 0, oi)),         # output
            pl.BlockSpec((tI, tO), lambda oi, ii: (ii, oi)),             # mus
            pl.BlockSpec((tI, tO), lambda oi, ii: (ii, oi)),             # stds
        ),
        scratch_shapes=[pltpu.VMEM((B, S * tO), jnp.float32)],           # matmul acc
    )
    output, weight_mus, weight_stds = pl.pallas_call(
        kernel,
        out_shape=out_shapes,
        grid_spec=grid_spec,
        compiler_params=pltpu.CompilerParams(
            dimension_semantics=("parallel", "arbitrary")),
        cost_estimate=pl.CostEstimate(
            flops=2 * S * B * I * O,
            transcendentals=0,
            bytes_accessed=4 * (S * N * I * O + N * I * O + B * I
                                + S * B * O + 2 * I * O)),
    )(x.astype(jnp.float32), state_nio, std_laplace.astype(jnp.float32))

    ave_fly_time = 0.0
    return output, weight_mus, weight_stds, ave_fly_time


def _reference(x, current_state, std_laplace_snio, offset=7.2, scale=1.0):
    """Pure-JAX reference mirroring the PyTorch math (for sanity check)."""
    state = jnp.transpose(current_state, (2, 0, 1)).astype(jnp.float32)   # (N, I, O)
    rs = -0.0058 * state**2 + 0.0324 * state + 0.0141
    read = state[None] + rs[None] * std_laplace_snio                      # (S, N, I, O)
    read_sum = jnp.sum(read, axis=1)                                      # (S, I, O)
    w = (read_sum - offset) / scale
    mus = (jnp.mean(read_sum, axis=0) - offset) / scale
    stds = jnp.std(read_sum, axis=0, ddof=1) / scale
    out = jnp.einsum("bi,sio->sbo", x, w)
    return out, mus, stds


if __name__ == "__main__":
    B, I, O, N, S = 8, 32, 16, 3, 5       # batch, input_dim, output_dim, N devices, no_sample
    init_states = [1.4, 2.4, 3.2]
    offset, scale = 7.2, 1.0

    key = jax.random.PRNGKey(0)
    k_state, k_x, k_lap = jax.random.split(key, 3)

    # deterministic parameter init: current_state[:, :, idx] ~ U(init_state-0.7, init_state+0.7)
    state_keys = jax.random.split(k_state, N)
    current_state = jnp.stack(
        [jax.random.uniform(state_keys[i], (I, O), jnp.float32,
                            minval=init_states[i] - 0.7, maxval=init_states[i] + 0.7)
         for i in range(N)],
        axis=-1,
    )                                                              # (I, O, N)

    x = jax.random.normal(k_x, (B, I), dtype=jnp.float32)

    # standard Laplace draws (np.random.laplace equivalent, loc=0, scale=1), generated
    # directly in kernel-native (S, N, I, O) layout; per-device read_scale applied in-kernel.
    std_laplace = jax.random.laplace(k_lap, (S, N, I, O)).astype(jnp.float32)

    out, mus, stds, ave_fly_time = xbarray_forward(
        x, current_state, std_laplace, offset=offset, scale=scale)
    jax.block_until_ready((out, mus, stds))

    ref_out, ref_mus, ref_stds = _reference(x, current_state, std_laplace, offset, scale)
    assert out.shape == (S, B, O) and mus.shape == (I, O) and stds.shape == (I, O)
    assert jnp.allclose(out, ref_out, atol=1e-4, rtol=1e-4)
    assert jnp.allclose(mus, ref_mus, atol=1e-5, rtol=1e-5)
    assert jnp.allclose(stds, ref_stds, atol=1e-5, rtol=1e-5)

    # TODO(synk): Platform_device (non-simulation hardware path) and clip_win() state
    # mutation are not part of the forward hot path and are not implemented.
    print("KERNEL_OK")
</pallas_src>

<mosaic_0001>
module attributes {stable_mosaic.version = 11 : i64} {
  func.func @xbarray_kernel(%arg0: i32, %arg1: i32, %arg2: memref<8x32xf32, #tpu.memory_space<vmem>>, %arg3: memref<3x32x16xf32, #tpu.memory_space<vmem>>, %arg4: memref<5x3x32x16xf32, #tpu.memory_space<vmem>>, %arg5: memref<5x8x16xf32, #tpu.memory_space<vmem>>, %arg6: memref<32x16xf32, #tpu.memory_space<vmem>>, %arg7: memref<32x16xf32, #tpu.memory_space<vmem>>, %arg8: memref<8x80xf32, #tpu.memory_space<vmem>>) attributes {dimension_semantics = [#tpu.dimension_semantics<parallel>, #tpu.dimension_semantics<arbitrary>], iteration_bounds = array<i64: 1, 1>, scalar_prefetch = 0 : i64, scratch_operands = 1 : i64, tpu.core_type = #tpu.core_type<tc>, window_params = [{transform_indices = @transform_0, window_bounds = array<i64: 8, 32>}, {transform_indices = @transform_1, window_bounds = array<i64: 3, 32, 16>}, {transform_indices = @transform_2, window_bounds = array<i64: 5, 3, 32, 16>}, {transform_indices = @transform_3, window_bounds = array<i64: 5, 8, 16>}, {transform_indices = @transform_4, window_bounds = array<i64: 32, 16>}, {transform_indices = @transform_5, window_bounds = array<i64: 32, 16>}]} {
    %c0_i32 = arith.constant 0 : i32
    %0 = arith.cmpi eq, %arg1, %c0_i32 : i32
    %1 = arith.extui %0 : i1 to i32
    %c0_i32_0 = arith.constant 0 : i32
    %2 = arith.cmpi ne, %1, %c0_i32_0 : i32
    scf.if %2 {
      %cst_90 = arith.constant 0.000000e+00 : f32
      %163 = vector.broadcast %cst_90 : f32 to vector<8x80xf32>
      %c0_91 = arith.constant 0 : index
      %c0_92 = arith.constant 0 : index
      %164 = vector.load %arg8[%c0_91, %c0_92] : memref<8x80xf32, #tpu.memory_space<vmem>>, vector<8x80xf32>
      tpu.vector_store %arg8[%c0_91, %c0_92], %163 {strides = array<i32>} : memref<8x80xf32, #tpu.memory_space<vmem>>, vector<8x80xf32>,
    } else {
    }
    %c0 = arith.constant 0 : index
    %c0_1 = arith.constant 0 : index
    %c0_2 = arith.constant 0 : index
    %3 = vector.load %arg3[%c0, %c0_1, %c0_2] : memref<3x32x16xf32, #tpu.memory_space<vmem>>, vector<3x32x16xf32>
    %cst = arith.constant -5.800000e-03 : f32
    %4 = vector.broadcast %cst : f32 to vector<3x32x16xf32>
    %5 = arith.mulf %4, %3 : vector<3x32x16xf32>
    %6 = arith.mulf %5, %3 : vector<3x32x16xf32>
    %cst_3 = arith.constant 3.240000e-02 : f32
    %7 = vector.broadcast %cst_3 : f32 to vector<3x32x16xf32>
    %8 = arith.mulf %7, %3 : vector<3x32x16xf32>
    %9 = arith.addf %6, %8 : vector<3x32x16xf32>
    %cst_4 = arith.constant 1.410000e-02 : f32
    %10 = vector.broadcast %cst_4 : f32 to vector<3x32x16xf32>
    %11 = arith.addf %9, %10 : vector<3x32x16xf32>
    %cst_5 = arith.constant dense<0.000000e+00> : vector<32x16xf32>
    %12 = vector.multi_reduction <add>, %3, %cst_5 [0] : vector<3x32x16xf32> to vector<32x16xf32>
    %13 = vector.extract_strided_slice %11 {offsets = [0, 0, 0], sizes = [1, 32, 16], strides = [1, 1, 1]} : vector<3x32x16xf32> to vector<1x32x16xf32>
    %14 = vector.shape_cast %13 : vector<1x32x16xf32> to vector<32x16xf32>
    %c0_6 = arith.constant 0 : index
    %c0_7 = arith.constant 0 : index
    %c0_8 = arith.constant 0 : index
    %c0_9 = arith.constant 0 : index
    %15 = vector.load %arg4[%c0_6, %c0_7, %c0_8, %c0_9] : memref<5x3x32x16xf32, #tpu.memory_space<vmem>>, vector<1x1x32x16xf32>
    %16 = vector.shape_cast %15 : vector<1x1x32x16xf32> to vector<32x16xf32>
    %17 = arith.mulf %14, %16 : vector<32x16xf32>
    %18 = vector.extract_strided_slice %11 {offsets = [1, 0, 0], sizes = [1, 32, 16], strides = [1, 1, 1]} : vector<3x32x16xf32> to vector<1x32x16xf32>
    %19 = vector.shape_cast %18 : vector<1x32x16xf32> to vector<32x16xf32>
    %c0_10 = arith.constant 0 : index
    %c1 = arith.constant 1 : index
    %c0_11 = arith.constant 0 : index
    %c0_12 = arith.constant 0 : index
    %20 = vector.load %arg4[%c0_10, %c1, %c0_11, %c0_12] : memref<5x3x32x16xf32, #tpu.memory_space<vmem>>, vector<1x1x32x16xf32>
    %21 = vector.shape_cast %20 : vector<1x1x32x16xf32> to vector<32x16xf32>
    %22 = arith.mulf %19, %21 : vector<32x16xf32>
    %23 = arith.addf %17, %22 : vector<32x16xf32>
    %24 = vector.extract_strided_slice %11 {offsets = [2, 0, 0], sizes = [1, 32, 16], strides = [1, 1, 1]} : vector<3x32x16xf32> to vector<1x32x16xf32>
    %25 = vector.shape_cast %24 : vector<1x32x16xf32> to vector<32x16xf32>
    %c0_13 = arith.constant 0 : index
    %c2 = arith.constant 2 : index
    %c0_14 = arith.constant 0 : index
    %c0_15 = arith.constant 0 : index
    %26 = vector.load %arg4[%c0_13, %c2, %c0_14, %c0_15] : memref<5x3x32x16xf32, #tpu.memory_space<vmem>>, vector<1x1x32x16xf32>
    %27 = vector.shape_cast %26 : vector<1x1x32x16xf32> to vector<32x16xf32>
    %28 = arith.mulf %25, %27 : vector<32x16xf32>
    %29 = arith.addf %23, %28 : vector<32x16xf32>
    %30 = arith.addf %12, %29 : vector<32x16xf32>
    %31 = vector.extract_strided_slice %11 {offsets = [0, 0, 0], sizes = [1, 32, 16], strides = [1, 1, 1]} : vector<3x32x16xf32> to vector<1x32x16xf32>
    %32 = vector.shape_cast %31 : vector<1x32x16xf32> to vector<32x16xf32>
    %c1_16 = arith.constant 1 : index
    %c0_17 = arith.constant 0 : index
    %c0_18 = arith.constant 0 : index
    %c0_19 = arith.constant 0 : index
    %33 = vector.load %arg4[%c1_16, %c0_17, %c0_18, %c0_19] : memref<5x3x32x16xf32, #tpu.memory_space<vmem>>, vector<1x1x32x16xf32>
    %34 = vector.shape_cast %33 : vector<1x1x32x16xf32> to vector<32x16xf32>
    %35 = arith.mulf %32, %34 : vector<32x16xf32>
    %36 = vector.extract_strided_slice %11 {offsets = [1, 0, 0], sizes = [1, 32, 16], strides = [1, 1, 1]} : vector<3x32x16xf32> to vector<1x32x16xf32>
    %37 = vector.shape_cast %36 : vector<1x32x16xf32> to vector<32x16xf32>
    %c1_20 = arith.constant 1 : index
    %c1_21 = arith.constant 1 : index
    %c0_22 = arith.constant 0 : index
    %c0_23 = arith.constant 0 : index
    %38 = vector.load %arg4[%c1_20, %c1_21, %c0_22, %c0_23] : memref<5x3x32x16xf32, #tpu.memory_space<vmem>>, vector<1x1x32x16xf32>
    %39 = vector.shape_cast %38 : vector<1x1x32x16xf32> to vector<32x16xf32>
    %40 = arith.mulf %37, %39 : vector<32x16xf32>
    %41 = arith.addf %35, %40 : vector<32x16xf32>
    %42 = vector.extract_strided_slice %11 {offsets = [2, 0, 0], sizes = [1, 32, 16], strides = [1, 1, 1]} : vector<3x32x16xf32> to vector<1x32x16xf32>
    %43 = vector.shape_cast %42 : vector<1x32x16xf32> to vector<32x16xf32>
    %c1_24 = arith.constant 1 : index
    %c2_25 = arith.constant 2 : index
    %c0_26 = arith.constant 0 : index
    %c0_27 = arith.constant 0 : index
    %44 = vector.load %arg4[%c1_24, %c2_25, %c0_26, %c0_27] : memref<5x3x32x16xf32, #tpu.memory_space<vmem>>, vector<1x1x32x16xf32>
    %45 = vector.shape_cast %44 : vector<1x1x32x16xf32> to vector<32x16xf32>
    %46 = arith.mulf %43, %45 : vector<32x16xf32>
    %47 = arith.addf %41, %46 : vector<32x16xf32>
    %48 = arith.addf %12, %47 : vector<32x16xf32>
    %49 = vector.extract_strided_slice %11 {offsets = [0, 0, 0], sizes = [1, 32, 16], strides = [1, 1, 1]} : vector<3x32x16xf32> to vector<1x32x16xf32>
    %50 = vector.shape_cast %49 : vector<1x32x16xf32> to vector<32x16xf32>
    %c2_28 = arith.constant 2 : index
    %c0_29 = arith.constant 0 : index
    %c0_30 = arith.constant 0 : index
    %c0_31 = arith.constant 0 : index
    %51 = vector.load %arg4[%c2_28, %c0_29, %c0_30, %c0_31] : memref<5x3x32x16xf32, #tpu.memory_space<vmem>>, vector<1x1x32x16xf32>
    %52 = vector.shape_cast %51 : vector<1x1x32x16xf32> to vector<32x16xf32>
    %53 = arith.mulf %50, %52 : vector<32x16xf32>
    %54 = vector.extract_strided_slice %11 {offsets = [1, 0, 0], sizes = [1, 32, 16], strides = [1, 1, 1]} : vector<3x32x16xf32> to vector<1x32x16xf32>
    %55 = vector.shape_cast %54 : vector<1x32x16xf32> to vector<32x16xf32>
    %c2_32 = arith.constant 2 : index
    %c1_33 = arith.constant 1 : index
    %c0_34 = arith.constant 0 : index
    %c0_35 = arith.constant 0 : index
    %56 = vector.load %arg4[%c2_32, %c1_33, %c0_34, %c0_35] : memref<5x3x32x16xf32, #tpu.memory_space<vmem>>, vector<1x1x32x16xf32>
    %57 = vector.shape_cast %56 : vector<1x1x32x16xf32> to vector<32x16xf32>
    %58 = arith.mulf %55, %57 : vector<32x16xf32>
    %59 = arith.addf %53, %58 : vector<32x16xf32>
    %60 = vector.extract_strided_slice %11 {offsets = [2, 0, 0], sizes = [1, 32, 16], strides = [1, 1, 1]} : vector<3x32x16xf32> to vector<1x32x16xf32>
    %61 = vector.shape_cast %60 : vector<1x32x16xf32> to vector<32x16xf32>
    %c2_36 = arith.constant 2 : index
    %c2_37 = arith.constant 2 : index
    %c0_38 = arith.constant 0 : index
    %c0_39 = arith.constant 0 : index
    %62 = vector.load %arg4[%c2_36, %c2_37, %c0_38, %c0_39] : memref<5x3x32x16xf32, #tpu.memory_space<vmem>>, vector<1x1x32x16xf32>
    %63 = vector.shape_cast %62 : vector<1x1x32x16xf32> to vector<32x16xf32>
    %64 = arith.mulf %61, %63 : vector<32x16xf32>
    %65 = arith.addf %59, %64 : vector<32x16xf32>
    %66 = arith.addf %12, %65 : vector<32x16xf32>
    %67 = vector.extract_strided_slice %11 {offsets = [0, 0, 0], sizes = [1, 32, 16], strides = [1, 1, 1]} : vector<3x32x16xf32> to vector<1x32x16xf32>
    %68 = vector.shape_cast %67 : vector<1x32x16xf32> to vector<32x16xf32>
    %c3 = arith.constant 3 : index
    %c0_40 = arith.constant 0 : index
    %c0_41 = arith.constant 0 : index
    %c0_42 = arith.constant 0 : index
    %69 = vector.load %arg4[%c3, %c0_40, %c0_41, %c0_42] : memref<5x3x32x16xf32, #tpu.memory_space<vmem>>, vector<1x1x32x16xf32>
    %70 = vector.shape_cast %69 : vector<1x1x32x16xf32> to vector<32x16xf32>
    %71 = arith.mulf %68, %70 : vector<32x16xf32>
    %72 = vector.extract_strided_slice %11 {offsets = [1, 0, 0], sizes = [1, 32, 16], strides = [1, 1, 1]} : vector<3x32x16xf32> to vector<1x32x16xf32>
    %73 = vector.shape_cast %72 : vector<1x32x16xf32> to vector<32x16xf32>
    %c3_43 = arith.constant 3 : index
    %c1_44 = arith.constant 1 : index
    %c0_45 = arith.constant 0 : index
    %c0_46 = arith.constant 0 : index
    %74 = vector.load %arg4[%c3_43, %c1_44, %c0_45, %c0_46] : memref<5x3x32x16xf32, #tpu.memory_space<vmem>>, vector<1x1x32x16xf32>
    %75 = vector.shape_cast %74 : vector<1x1x32x16xf32> to vector<32x16xf32>
    %76 = arith.mulf %73, %75 : vector<32x16xf32>
    %77 = arith.addf %71, %76 : vector<32x16xf32>
    %78 = vector.extract_strided_slice %11 {offsets = [2, 0, 0], sizes = [1, 32, 16], strides = [1, 1, 1]} : vector<3x32x16xf32> to vector<1x32x16xf32>
    %79 = vector.shape_cast %78 : vector<1x32x16xf32> to vector<32x16xf32>
    %c3_47 = arith.constant 3 : index
    %c2_48 = arith.constant 2 : index
    %c0_49 = arith.constant 0 : index
    %c0_50 = arith.constant 0 : index
    %80 = vector.load %arg4[%c3_47, %c2_48, %c0_49, %c0_50] : memref<5x3x32x16xf32, #tpu.memory_space<vmem>>, vector<1x1x32x16xf32>
    %81 = vector.shape_cast %80 : vector<1x1x32x16xf32> to vector<32x16xf32>
    %82 = arith.mulf %79, %81 : vector<32x16xf32>
    %83 = arith.addf %77, %82 : vector<32x16xf32>
    %84 = arith.addf %12, %83 : vector<32x16xf32>
    %85 = vector.extract_strided_slice %11 {offsets = [0, 0, 0], sizes = [1, 32, 16], strides = [1, 1, 1]} : vector<3x32x16xf32> to vector<1x32x16xf32>
    %86 = vector.shape_cast %85 : vector<1x32x16xf32> to vector<32x16xf32>
    %c4 = arith.constant 4 : index
    %c0_51 = arith.constant 0 : index
    %c0_52 = arith.constant 0 : index
    %c0_53 = arith.constant 0 : index
    %87 = vector.load %arg4[%c4, %c0_51, %c0_52, %c0_53] : memref<5x3x32x16xf32, #tpu.memory_space<vmem>>, vector<1x1x32x16xf32>
    %88 = vector.shape_cast %87 : vector<1x1x32x16xf32> to vector<32x16xf32>
    %89 = arith.mulf %86, %88 : vector<32x16xf32>
    %90 = vector.extract_strided_slice %11 {offsets = [1, 0, 0], sizes = [1, 32, 16], strides = [1, 1, 1]} : vector<3x32x16xf32> to vector<1x32x16xf32>
    %91 = vector.shape_cast %90 : vector<1x32x16xf32> to vector<32x16xf32>
    %c4_54 = arith.constant 4 : index
    %c1_55 = arith.constant 1 : index
    %c0_56 = arith.constant 0 : index
    %c0_57 = arith.constant 0 : index
    %92 = vector.load %arg4[%c4_54, %c1_55, %c0_56, %c0_57] : memref<5x3x32x16xf32, #tpu.memory_space<vmem>>, vector<1x1x32x16xf32>
    %93 = vector.shape_cast %92 : vector<1x1x32x16xf32> to vector<32x16xf32>
    %94 = arith.mulf %91, %93 : vector<32x16xf32>
    %95 = arith.addf %89, %94 : vector<32x16xf32>
    %96 = vector.extract_strided_slice %11 {offsets = [2, 0, 0], sizes = [1, 32, 16], strides = [1, 1, 1]} : vector<3x32x16xf32> to vector<1x32x16xf32>
    %97 = vector.shape_cast %96 : vector<1x32x16xf32> to vector<32x16xf32>
    %c4_58 = arith.constant 4 : index
    %c2_59 = arith.constant 2 : index
    %c0_60 = arith.constant 0 : index
    %c0_61 = arith.constant 0 : index
    %98 = vector.load %arg4[%c4_58, %c2_59, %c0_60, %c0_61] : memref<5x3x32x16xf32, #tpu.memory_space<vmem>>, vector<1x1x32x16xf32>
    %99 = vector.shape_cast %98 : vector<1x1x32x16xf32> to vector<32x16xf32>
    %100 = arith.mulf %97, %99 : vector<32x16xf32>
    %101 = arith.addf %95, %100 : vector<32x16xf32>
    %102 = arith.addf %12, %101 : vector<32x16xf32>
    %103 = arith.addf %30, %48 : vector<32x16xf32>
    %104 = arith.addf %103, %66 : vector<32x16xf32>
    %105 = arith.addf %104, %84 : vector<32x16xf32>
    %106 = arith.addf %105, %102 : vector<32x16xf32>
    %cst_62 = arith.constant 2.000000e-01 : f32
    %107 = vector.broadcast %cst_62 : f32 to vector<32x16xf32>
    %108 = arith.mulf %106, %107 : vector<32x16xf32>
    %109 = arith.subf %30, %108 : vector<32x16xf32>
    %110 = arith.mulf %109, %109 : vector<32x16xf32>
    %111 = arith.subf %48, %108 : vector<32x16xf32>
    %112 = arith.mulf %111, %111 : vector<32x16xf32>
    %113 = arith.addf %110, %112 : vector<32x16xf32>
    %114 = arith.subf %66, %108 : vector<32x16xf32>
    %115 = arith.mulf %114, %114 : vector<32x16xf32>
    %116 = arith.addf %113, %115 : vector<32x16xf32>
    %117 = arith.subf %84, %108 : vector<32x16xf32>
    %118 = arith.mulf %117, %117 : vector<32x16xf32>
    %119 = arith.addf %116, %118 : vector<32x16xf32>
    %120 = arith.subf %102, %108 : vector<32x16xf32>
    %121 = arith.mulf %120, %120 : vector<32x16xf32>
    %122 = arith.addf %119, %121 : vector<32x16xf32>
    %cst_63 = arith.constant 2.500000e-01 : f32
    %123 = vector.broadcast %cst_63 : f32 to vector<32x16xf32>
    %124 = arith.mulf %122, %123 : vector<32x16xf32>
    %125 = math.sqrt %124 : vector<32x16xf32>
    %cst_64 = arith.constant 7.1999998 : f32
    %126 = vector.broadcast %cst_64 : f32 to vector<32x16xf32>
    %127 = arith.subf %108, %126 : vector<32x16xf32>
    %cst_65 = arith.constant 1.000000e+00 : f32
    %128 = vector.broadcast %cst_65 : f32 to vector<32x16xf32>
    %129 = arith.mulf %127, %128 : vector<32x16xf32>
    %c0_66 = arith.constant 0 : index
    %c0_67 = arith.constant 0 : index
    %130 = vector.load %arg6[%c0_66, %c0_67] : memref<32x16xf32, #tpu.memory_space<vmem>>, vector<32x16xf32>
    tpu.vector_store %arg6[%c0_66, %c0_67], %129 {strides = array<i32>} : memref<32x16xf32, #tpu.memory_space<vmem>>, vector<32x16xf32>,
    %cst_68 = arith.constant 1.000000e+00 : f32
    %131 = vector.broadcast %cst_68 : f32 to vector<32x16xf32>
    %132 = arith.mulf %125, %131 : vector<32x16xf32>
    %c0_69 = arith.constant 0 : index
    %c0_70 = arith.constant 0 : index
    %133 = vector.load %arg7[%c0_69, %c0_70] : memref<32x16xf32, #tpu.memory_space<vmem>>, vector<32x16xf32>
    tpu.vector_store %arg7[%c0_69, %c0_70], %132 {strides = array<i32>} : memref<32x16xf32, #tpu.memory_space<vmem>>, vector<32x16xf32>,
    %cst_71 = arith.constant 7.1999998 : f32
    %134 = vector.broadcast %cst_71 : f32 to vector<32x16xf32>
    %135 = arith.subf %30, %134 : vector<32x16xf32>
    %cst_72 = arith.constant 1.000000e+00 : f32
    %136 = vector.broadcast %cst_72 : f32 to vector<32x16xf32>
    %137 = arith.mulf %135, %136 : vector<32x16xf32>
    %cst_73 = arith.constant 7.1999998 : f32
    %138 = vector.broadcast %cst_73 : f32 to vector<32x16xf32>
    %139 = arith.subf %48, %138 : vector<32x16xf32>
    %cst_74 = arith.constant 1.000000e+00 : f32
    %140 = vector.broadcast %cst_74 : f32 to vector<32x16xf32>
    %141 = arith.mulf %139, %140 : vector<32x16xf32>
    %cst_75 = arith.constant 7.1999998 : f32
    %142 = vector.broadcast %cst_75 : f32 to vector<32x16xf32>
    %143 = arith.subf %66, %142 : vector<32x16xf32>
    %cst_76 = arith.constant 1.000000e+00 : f32
    %144 = vector.broadcast %cst_76 : f32 to vector<32x16xf32>
    %145 = arith.mulf %143, %144 : vector<32x16xf32>
    %cst_77 = arith.constant 7.1999998 : f32
    %146 = vector.broadcast %cst_77 : f32 to vector<32x16xf32>
    %147 = arith.subf %84, %146 : vector<32x16xf32>
    %cst_78 = arith.constant 1.000000e+00 : f32
    %148 = vector.broadcast %cst_78 : f32 to vector<32x16xf32>
    %149 = arith.mulf %147, %148 : vector<32x16xf32>
    %cst_79 = arith.constant 7.1999998 : f32
    %150 = vector.broadcast %cst_79 : f32 to vector<32x16xf32>
    %151 = arith.subf %102, %150 : vector<32x16xf32>
    %cst_80 = arith.constant 1.000000e+00 : f32
    %152 = vector.broadcast %cst_80 : f32 to vector<32x16xf32>
    %153 = arith.mulf %151, %152 : vector<32x16xf32>
    %154 = tpu.concatenate %137, %141, %145, %149, %153 in 1 : vector<32x16xf32>, vector<32x16xf32>, vector<32x16xf32>, vector<32x16xf32>, vector<32x16xf32> -> vector<32x80xf32>
    %c0_81 = arith.constant 0 : index
    %c0_82 = arith.constant 0 : index
    %155 = vector.load %arg8[%c0_81, %c0_82] : memref<8x80xf32, #tpu.memory_space<vmem>>, vector<8x80xf32>
    %c0_83 = arith.constant 0 : index
    %c0_84 = arith.constant 0 : index
    %156 = vector.load %arg2[%c0_83, %c0_84] : memref<8x32xf32, #tpu.memory_space<vmem>>, vector<8x32xf32>
    %cst_85 = arith.constant dense<0.000000e+00> : vector<8x80xf32>
    %157 = tpu.matmul %156, %154, %cst_85 {dimension_numbers = #tpu.dot_dimension_numbers<[1], [0], [0], [1], [0, 0, 1, 1], [], []>} : vector<8x32xf32>, vector<32x80xf32>, vector<8x80xf32> -> vector<8x80xf32>
    %158 = arith.addf %155, %157 : vector<8x80xf32>
    %c0_86 = arith.constant 0 : index
    %c0_87 = arith.constant 0 : index
    %159 = vector.load %arg8[%c0_86, %c0_87] : memref<8x80xf32, #tpu.memory_space<vmem>>, vector<8x80xf32>
    tpu.vector_store %arg8[%c0_86, %c0_87], %158 {strides = array<i32>} : memref<8x80xf32, #tpu.memory_space<vmem>>, vector<8x80xf32>,
    %c0_i32_88 = arith.constant 0 : i32
    %160 = arith.cmpi eq, %arg1, %c0_i32_88 : i32
    %161 = arith.extui %160 : i1 to i32
    %c0_i32_89 = arith.constant 0 : i32
    %162 = arith.cmpi ne, %161, %c0_i32_89 : i32
    scf.if %162 {
      %c0_90 = arith.constant 0 : index
      %c0_91 = arith.constant 0 : index
      %163 = vector.load %arg8[%c0_90, %c0_91] : memref<8x80xf32, #tpu.memory_space<vmem>>, vector<8x16xf32>
      %c0_92 = arith.constant 0 : index
      %c0_93 = arith.constant 0 : index
      %c0_94 = arith.constant 0 : index
      %164 = vector.load %arg5[%c0_92, %c0_93, %c0_94] : memref<5x8x16xf32, #tpu.memory_space<vmem>>, vector<1x8x16xf32>
      %165 = vector.shape_cast %164 : vector<1x8x16xf32> to vector<8x16xf32>
      %166 = vector.shape_cast %163 : vector<8x16xf32> to vector<1x8x16xf32>
      tpu.vector_store %arg5[%c0_92, %c0_93, %c0_94], %166 {strides = array<i32>} : memref<5x8x16xf32, #tpu.memory_space<vmem>>, vector<1x8x16xf32>,
      %c0_95 = arith.constant 0 : index
      %c16 = arith.constant 16 : index
      %167 = vector.load %arg8[%c0_95, %c16] : memref<8x80xf32, #tpu.memory_space<vmem>>, vector<8x16xf32>
      %c1_96 = arith.constant 1 : index
      %c0_97 = arith.constant 0 : index
      %c0_98 = arith.constant 0 : index
      %168 = vector.load %arg5[%c1_96, %c0_97, %c0_98] : memref<5x8x16xf32, #tpu.memory_space<vmem>>, vector<1x8x16xf32>
      %169 = vector.shape_cast %168 : vector<1x8x16xf32> to vector<8x16xf32>
      %170 = vector.shape_cast %167 : vector<8x16xf32> to vector<1x8x16xf32>
      tpu.vector_store %arg5[%c1_96, %c0_97, %c0_98], %170 {strides = array<i32>} : memref<5x8x16xf32, #tpu.memory_space<vmem>>, vector<1x8x16xf32>,
      %c0_99 = arith.constant 0 : index
      %c32 = arith.constant 32 : index
      %171 = vector.load %arg8[%c0_99, %c32] : memref<8x80xf32, #tpu.memory_space<vmem>>, vector<8x16xf32>
      %c2_100 = arith.constant 2 : index
      %c0_101 = arith.constant 0 : index
      %c0_102 = arith.constant 0 : index
      %172 = vector.load %arg5[%c2_100, %c0_101, %c0_102] : memref<5x8x16xf32, #tpu.memory_space<vmem>>, vector<1x8x16xf32>
      %173 = vector.shape_cast %172 : vector<1x8x16xf32> to vector<8x16xf32>
      %174 = vector.shape_cast %171 : vector<8x16xf32> to vector<1x8x16xf32>
      tpu.vector_store %arg5[%c2_100, %c0_101, %c0_102], %174 {strides = array<i32>} : memref<5x8x16xf32, #tpu.memory_space<vmem>>, vector<1x8x16xf32>,
      %c0_103 = arith.constant 0 : index
      %c48 = arith.constant 48 : index
      %175 = vector.load %arg8[%c0_103, %c48] : memref<8x80xf32, #tpu.memory_space<vmem>>, vector<8x16xf32>
      %c3_104 = arith.constant 3 : index
      %c0_105 = arith.constant 0 : index
      %c0_106 = arith.constant 0 : index
      %176 = vector.load %arg5[%c3_104, %c0_105, %c0_106] : memref<5x8x16xf32, #tpu.memory_space<vmem>>, vector<1x8x16xf32>
      %177 = vector.shape_cast %176 : vector<1x8x16xf32> to vector<8x16xf32>
      %178 = vector.shape_cast %175 : vector<8x16xf32> to vector<1x8x16xf32>
      tpu.vector_store %arg5[%c3_104, %c0_105, %c0_106], %178 {strides = array<i32>} : memref<5x8x16xf32, #tpu.memory_space<vmem>>, vector<1x8x16xf32>,
      %c0_107 = arith.constant 0 : index
      %c64 = arith.constant 64 : index
      %179 = vector.load %arg8[%c0_107, %c64] : memref<8x80xf32, #tpu.memory_space<vmem>>, vector<8x16xf32>
      %c4_108 = arith.constant 4 : index
      %c0_109 = arith.constant 0 : index
      %c0_110 = arith.constant 0 : index
      %180 = vector.load %arg5[%c4_108, %c0_109, %c0_110] : memref<5x8x16xf32, #tpu.memory_space<vmem>>, vector<1x8x16xf32>
      %181 = vector.shape_cast %180 : vector<1x8x16xf32> to vector<8x16xf32>
      %182 = vector.shape_cast %179 : vector<8x16xf32> to vector<1x8x16xf32>
      tpu.vector_store %arg5[%c4_108, %c0_109, %c0_110], %182 {strides = array<i32>} : memref<5x8x16xf32, #tpu.memory_space<vmem>>, vector<1x8x16xf32>,
    } else {
    }
    return
  }
  func.func @transform_0(%arg0: i32, %arg1: i32) -> (i32, i32) {
    %c0_i32 = arith.constant 0 : i32
    %c0_i32_0 = arith.constant 0 : i32
    return %c0_i32, %arg1 : i32, i32
  }
  func.func @transform_1(%arg0: i32, %arg1: i32) -> (i32, i32, i32) {
    %c0_i32 = arith.constant 0 : i32
    %c0_i32_0 = arith.constant 0 : i32
    return %c0_i32, %arg1, %arg0 : i32, i32, i32
  }
  func.func @transform_2(%arg0: i32, %arg1: i32) -> (i32, i32, i32, i32) {
    %c0_i32 = arith.constant 0 : i32
    %c0_i32_0 = arith.constant 0 : i32
    %c0_i32_1 = arith.constant 0 : i32
    return %c0_i32, %c0_i32_0, %arg1, %arg0 : i32, i32, i32, i32
  }
  func.func @transform_3(%arg0: i32, %arg1: i32) -> (i32, i32, i32) {
    %c0_i32 = arith.constant 0 : i32
    %c0_i32_0 = arith.constant 0 : i32
    %c0_i32_1 = arith.constant 0 : i32
    return %c0_i32, %c0_i32_0, %arg0 : i32, i32, i32
  }
  func.func @transform_4(%arg0: i32, %arg1: i32) -> (i32, i32) {
    %c0_i32 = arith.constant 0 : i32
    return %arg1, %arg0 : i32, i32
  }
  func.func @transform_5(%arg0: i32, %arg1: i32) -> (i32, i32) {
    %c0_i32 = arith.constant 0 : i32
    return %arg1, %arg0 : i32, i32
  }
}

</mosaic_0001>

<llo_original>
// kernel: tpu_custom_call.1
$region0: #{tpu_custom_call.1}
  #allocation0 [shape = 'u32[]', space=smem, size = 0x4, offset = 0x4, fixed_abs, tag = 'smem constant byte address 0x4 - core index']
  #allocation1 [shape = 'u32[144,128]{1,0:T(1,128)}', space=vmem, size = 0x12000, scoped, tag = 'internal scratch']
  #allocation2 [shape = 'f32[8,80]{1,0:T(8,128)}', space=vmem, size = 0x1000, scoped, tag = 'scratch operand']
  %s0 = inlined_call_operand.vmem [shape: f32[8,32], index: 0, kind: input, shape index: {}]
  %s1 = inlined_call_operand.vmem [shape: f32[3,32,16], index: 1, kind: input, shape index: {}]
  %s2 = inlined_call_operand.vmem [shape: f32[5,3,32,16], index: 2, kind: input, shape index: {}]
  %s3 = inlined_call_operand.hbm [shape: f32[5,8,16], index: 3, kind: output, shape index: {0}]
  %s4 = inlined_call_operand.vmem [shape: f32[32,16], index: 4, kind: output, shape index: {1}]
  %s5 = inlined_call_operand.vmem [shape: f32[32,16], index: 5, kind: output, shape index: {2}]
  %6 = xla_tuple %s3, %s4, %s5
  %s7 = sld [smem:[#allocation0]]
  $region46: #{tpu_custom_call.1} parent=0
    _
  %s9 = ssub.s32 1, %s7
  %s10 = scalar_select 0, %s9, %s7
  $region1: #{tpu_custom_call.1} parent=0
    #allocation3 [shape = 'u8[20480]{0}', space=vmem, size = 0x5000, scoped, tag = 'output window, operand 0, single buffered']
    #allocation4 [shape = 's32[1]{0}', space=sflag, size = 0x4, scoped, tag = 'scoped memory for tpu_custom_call.1']
    %11 = vsyncpa [#allocation4], 0
    // Predicated region
    $region2: #{tpu_custom_call.1} parent=1 // pred_check
      _
    $region3: #{tpu_custom_call.1} parent=1 // pred_check_branch
      %13 = sbr.rel (0) target = $region5
    $region4: #{tpu_custom_call.1} parent=1 // pred_region
      _
    $region5: #{tpu_custom_call.1} parent=1 // pred_fallthru
      _
    // Predicated region
    $region6: #{tpu_custom_call.1} parent=1 // pred_check
      _
    $region7: #{tpu_custom_call.1} parent=1 // pred_check_branch
      %15 = sbr.rel (0) target = $region9
    $region8: #{tpu_custom_call.1} parent=1 // pred_region
      _
    $region9: #{tpu_custom_call.1} parent=1 // pred_fallthru
      _
    // Predicated region
    $region10: #{tpu_custom_call.1} parent=1 // pred_check
      _
    $region11: #{tpu_custom_call.1} parent=1 // pred_check_branch
      %17 = sbr.rel (0) target = $region13
    $region12: #{tpu_custom_call.1} parent=1 // pred_region
      _
    $region13: #{tpu_custom_call.1} parent=1 // pred_fallthru
      _
    %p18 = scmp.eq.s32.totalorder 0, 0
    // Predicated region
    $region14: #{tpu_custom_call.1} parent=1 // pred_check
      %p19 = pneg %p18
    $region15: #{tpu_custom_call.1} parent=1 // pred_check_branch
      %21 = sbr.rel (%p19) target = $region17
    $region16: #{tpu_custom_call.1} parent=1 // pred_region
      %vm22 = vcmask 654336
      %23 = vst.msk [vmem:[#allocation2] sm:$0xff] %vm22, 0.0
    $region17: #{tpu_custom_call.1} parent=1 // pred_fallthru
      _
    %v24 = vld [vmem:[%s1] sm:$0xff]
    %v25 = vld [vmem:[%s1 + $0x8] sm:$0xff]
    %v26 = vld [vmem:[%s1 + $0x10] sm:$0xff]
    %v27 = vld [vmem:[%s1 + $0x18] sm:$0xff]
    %v28 = vld [vmem:[%s1 + $0x20] sm:$0xff]
    %v29 = vld [vmem:[%s1 + $0x28] sm:$0xff]
    %v30 = vld [vmem:[%s1 + $0x30] sm:$0xff]
    %v31 = vld [vmem:[%s1 + $0x38] sm:$0xff]
    %v32 = vld [vmem:[%s1 + $0x40] sm:$0xff]
    %v33 = vld [vmem:[%s1 + $0x48] sm:$0xff]
    %v34 = vld [vmem:[%s1 + $0x50] sm:$0xff]
    %v35 = vld [vmem:[%s1 + $0x58] sm:$0xff]
    %v36 = vmul.f32 %v24, -0.0058
    %v37 = vmul.f32 %v25, -0.0058
    %v38 = vmul.f32 %v26, -0.0058
    %v39 = vmul.f32 %v27, -0.0058
    %v40 = vmul.f32 %v28, -0.0058
    %v41 = vmul.f32 %v29, -0.0058
    %v42 = vmul.f32 %v30, -0.0058
    %v43 = vmul.f32 %v31, -0.0058
    %v44 = vmul.f32 %v32, -0.0058
    %v45 = vmul.f32 %v33, -0.0058
    %v46 = vmul.f32 %v34, -0.0058
    %v47 = vmul.f32 %v35, -0.0058
    %v48 = vmul.f32 %v36, %v24
    %v49 = vmul.f32 %v37, %v25
    %v50 = vmul.f32 %v38, %v26
    %v51 = vmul.f32 %v39, %v27
    %v52 = vmul.f32 %v40, %v28
    %v53 = vmul.f32 %v41, %v29
    %v54 = vmul.f32 %v42, %v30
    %v55 = vmul.f32 %v43, %v31
    %v56 = vmul.f32 %v44, %v32
    %v57 = vmul.f32 %v45, %v33
    %v58 = vmul.f32 %v46, %v34
    %v59 = vmul.f32 %v47, %v35
    %v60 = vmul.f32 %v24, 0.0324
    %v61 = vmul.f32 %v25, 0.0324
    %v62 = vmul.f32 %v26, 0.0324
    %v63 = vmul.f32 %v27, 0.0324
    %v64 = vmul.f32 %v28, 0.0324
    %v65 = vmul.f32 %v29, 0.0324
    %v66 = vmul.f32 %v30, 0.0324
    %v67 = vmul.f32 %v31, 0.0324
    %v68 = vmul.f32 %v32, 0.0324
    %v69 = vmul.f32 %v33, 0.0324
    %v70 = vmul.f32 %v34, 0.0324
    %v71 = vmul.f32 %v35, 0.0324
    %v72 = vadd.f32 %v48, %v60
    %v73 = vadd.f32 %v49, %v61
    %v74 = vadd.f32 %v50, %v62
    %v75 = vadd.f32 %v51, %v63
    %v76 = vadd.f32 %v52, %v64
    %v77 = vadd.f32 %v53, %v65
    %v78 = vadd.f32 %v54, %v66
    %v79 = vadd.f32 %v55, %v67
    %v80 = vadd.f32 %v56, %v68
    %v81 = vadd.f32 %v57, %v69
    %v82 = vadd.f32 %v58, %v70
    %v83 = vadd.f32 %v59, %v71
    %v84 = vadd.f32 %v72, 0.0141
    %v85 = vadd.f32 %v73, 0.0141
    %v86 = vadd.f32 %v74, 0.0141
    %v87 = vadd.f32 %v75, 0.0141
    %v88 = vadd.f32 %v76, 0.0141
    %v89 = vadd.f32 %v77, 0.0141
    %v90 = vadd.f32 %v78, 0.0141
    %v91 = vadd.f32 %v79, 0.0141
    %v92 = vadd.f32 %v80, 0.0141
    %v93 = vadd.f32 %v81, 0.0141
    %v94 = vadd.f32 %v82, 0.0141
    %v95 = vadd.f32 %v83, 0.0141
    %vm96 = vcmask 130048
    %v97 = vsel %vm96, %v24, 0.0
    %v98 = vsel %vm96, %v28, 0.0
    %v99 = vadd.f32 %v97, %v98
    %v100 = vsel %vm96, %v32, 0.0
    %v101 = vadd.f32 %v99, %v100
    %v102 = vsel %vm96, %v25, 0.0
    %v103 = vsel %vm96, %v29, 0.0
    %v104 = vadd.f32 %v102, %v103
    %v105 = vsel %vm96, %v33, 0.0
    %v106 = vadd.f32 %v104, %v105
    %v107 = vsel %vm96, %v26, 0.0
    %v108 = vsel %vm96, %v30, 0.0
    %v109 = vadd.f32 %v107, %v108
    %v110 = vsel %vm96, %v34, 0.0
    %v111 = vadd.f32 %v109, %v110
    %v112 = vsel %vm96, %v27, 0.0
    %v113 = vsel %vm96, %v31, 0.0
    %v114 = vadd.f32 %v112, %v113
    %v115 = vsel %vm96, %v35, 0.0
    %v116 = vadd.f32 %v114, %v115
    %v117 = vld [vmem:[%s2] sm:$0xff]
    %v118 = vld [vmem:[%s2 + $0x8] sm:$0xff]
    %v119 = vld [vmem:[%s2 + $0x10] sm:$0xff]
    %v120 = vld [vmem:[%s2 + $0x18] sm:$0xff]
    %v121 = vmul.f32 %v84, %v117
    %v122 = vmul.f32 %v85, %v118
    %v123 = vmul.f32 %v86, %v119
    %v124 = vmul.f32 %v87, %v120
    %s125 = scalar_lea.vmem %s2, 32
    %v126 = vld [vmem:[%s125] sm:$0xff]
    %v127 = vld [vmem:[%s125 + $0x8] sm:$0xff]
    %v128 = vld [vmem:[%s125 + $0x10] sm:$0xff]
    %v129 = vld [vmem:[%s125 + $0x18] sm:$0xff]
    %v130 = vmul.f32 %v88, %v126
    %v131 = vmul.f32 %v89, %v127
    %v132 = vmul.f32 %v90, %v128
    %v133 = vmul.f32 %v91, %v129
    %v134 = vadd.f32 %v121, %v130
    %v135 = vadd.f32 %v122, %v131
    %v136 = vadd.f32 %v123, %v132
    %v137 = vadd.f32 %v124, %v133
    %s138 = scalar_lea.vmem %s2, 64
    %v139 = vld [vmem:[%s138] sm:$0xff]
    %v140 = vld [vmem:[%s138 + $0x8] sm:$0xff]
    %v141 = vld [vmem:[%s138 + $0x10] sm:$0xff]
    %v142 = vld [vmem:[%s138 + $0x18] sm:$0xff]
    %v143 = vmul.f32 %v92, %v139
    %v144 = vmul.f32 %v93, %v140
    %v145 = vmul.f32 %v94, %v141
    %v146 = vmul.f32 %v95, %v142
    %v147 = vadd.f32 %v134, %v143
    %v148 = vadd.f32 %v135, %v144
    %v149 = vadd.f32 %v136, %v145
    %v150 = vadd.f32 %v137, %v146
    %v151 = vadd.f32 %v101, %v147
    %v152 = vadd.f32 %v106, %v148
    %v153 = vadd.f32 %v111, %v149
    %v154 = vadd.f32 %v116, %v150
    %s155 = scalar_lea.vmem %s2, 96
    %v156 = vld [vmem:[%s155] sm:$0xff]
    %v157 = vld [vmem:[%s155 + $0x8] sm:$0xff]
    %v158 = vld [vmem:[%s155 + $0x10] sm:$0xff]
    %v159 = vld [vmem:[%s155 + $0x18] sm:$0xff]
    %v160 = vmul.f32 %v84, %v156
    %v161 = vmul.f32 %v85, %v157
    %v162 = vmul.f32 %v86, %v158
    %v163 = vmul.f32 %v87, %v159
    %s164 = scalar_lea.vmem %s2, 128
    %v165 = vld [vmem:[%s164] sm:$0xff]
    %v166 = vld [vmem:[%s164 + $0x8] sm:$0xff]
    %v167 = vld [vmem:[%s164 + $0x10] sm:$0xff]
    %v168 = vld [vmem:[%s164 + $0x18] sm:$0xff]
    %v169 = vmul.f32 %v88, %v165
    %v170 = vmul.f32 %v89, %v166
    %v171 = vmul.f32 %v90, %v167
    %v172 = vmul.f32 %v91, %v168
    %v173 = vadd.f32 %v160, %v169
    %v174 = vadd.f32 %v161, %v170
    %v175 = vadd.f32 %v162, %v171
    %v176 = vadd.f32 %v163, %v172
    %s177 = scalar_lea.vmem %s2, 160
    %v178 = vld [vmem:[%s177] sm:$0xff]
    %v179 = vld [vmem:[%s177 + $0x8] sm:$0xff]
    %v180 = vld [vmem:[%s177 + $0x10] sm:$0xff]
    %v181 = vld [vmem:[%s177 + $0x18] sm:$0xff]
    %v182 = vmul.f32 %v92, %v178
    %v183 = vmul.f32 %v93, %v179
    %v184 = vmul.f32 %v94, %v180
    %v185 = vmul.f32 %v95, %v181
    %v186 = vadd.f32 %v173, %v182
    %v187 = vadd.f32 %v174, %v183
    %v188 = vadd.f32 %v175, %v184
    %v189 = vadd.f32 %v176, %v185
    %v190 = vadd.f32 %v101, %v186
    %v191 = vadd.f32 %v106, %v187
    %v192 = vadd.f32 %v111, %v188
    %v193 = vadd.f32 %v116, %v189
    %s194 = scalar_lea.vmem %s2, 192
    %v195 = vld [vmem:[%s194] sm:$0xff]
    %v196 = vld [vmem:[%s194 + $0x8] sm:$0xff]
    %v197 = vld [vmem:[%s194 + $0x10] sm:$0xff]
    %v198 = vld [vmem:[%s194 + $0x18] sm:$0xff]
    %v199 = vmul.f32 %v84, %v195
    %v200 = vmul.f32 %v85, %v196
    %v201 = vmul.f32 %v86, %v197
    %v202 = vmul.f32 %v87, %v198
    %s203 = scalar_lea.vmem %s2, 224
    %v204 = vld [vmem:[%s203] sm:$0xff]
    %v205 = vld [vmem:[%s203 + $0x8] sm:$0xff]
    %v206 = vld [vmem:[%s203 + $0x10] sm:$0xff]
    %v207 = vld [vmem:[%s203 + $0x18] sm:$0xff]
    %v208 = vmul.f32 %v88, %v204
    %v209 = vmul.f32 %v89, %v205
    %v210 = vmul.f32 %v90, %v206
    %v211 = vmul.f32 %v91, %v207
    %v212 = vadd.f32 %v199, %v208
    %v213 = vadd.f32 %v200, %v209
    %v214 = vadd.f32 %v201, %v210
    %v215 = vadd.f32 %v202, %v211
    %s216 = scalar_lea.vmem %s2, 256
    %v217 = vld [vmem:[%s216] sm:$0xff]
    %v218 = vld [vmem:[%s216 + $0x8] sm:$0xff]
    %v219 = vld [vmem:[%s216 + $0x10] sm:$0xff]
    %v220 = vld [vmem:[%s216 + $0x18] sm:$0xff]
    %v221 = vmul.f32 %v92, %v217
    %v222 = vmul.f32 %v93, %v218
    %v223 = vmul.f32 %v94, %v219
    %v224 = vmul.f32 %v95, %v220
    %v225 = vadd.f32 %v212, %v221
    %v226 = vadd.f32 %v213, %v222
    %v227 = vadd.f32 %v214, %v223
    %v228 = vadd.f32 %v215, %v224
    %v229 = vadd.f32 %v101, %v225
    %v230 = vadd.f32 %v106, %v226
    %v231 = vadd.f32 %v111, %v227
    %v232 = vadd.f32 %v116, %v228
    %s233 = scalar_lea.vmem %s2, 288
    %v234 = vld [vmem:[%s233] sm:$0xff]
    %v235 = vld [vmem:[%s233 + $0x8] sm:$0xff]
    %v236 = vld [vmem:[%s233 + $0x10] sm:$0xff]
    %v237 = vld [vmem:[%s233 + $0x18] sm:$0xff]
    %v238 = vmul.f32 %v84, %v234
    %v239 = vmul.f32 %v85, %v235
    %v240 = vmul.f32 %v86, %v236
    %v241 = vmul.f32 %v87, %v237
    %s242 = scalar_lea.vmem %s2, 320
    %v243 = vld [vmem:[%s242] sm:$0xff]
    %v244 = vld [vmem:[%s242 + $0x8] sm:$0xff]
    %v245 = vld [vmem:[%s242 + $0x10] sm:$0xff]
    %v246 = vld [vmem:[%s242 + $0x18] sm:$0xff]
    %v247 = vmul.f32 %v88, %v243
    %v248 = vmul.f32 %v89, %v244
    %v249 = vmul.f32 %v90, %v245
    %v250 = vmul.f32 %v91, %v246
    %v251 = vadd.f32 %v238, %v247
    %v252 = vadd.f32 %v239, %v248
    %v253 = vadd.f32 %v240, %v249
    %v254 = vadd.f32 %v241, %v250
    %s255 = scalar_lea.vmem %s2, 352
    %v256 = vld [vmem:[%s255] sm:$0xff]
    %v257 = vld [vmem:[%s255 + $0x8] sm:$0xff]
    %v258 = vld [vmem:[%s255 + $0x10] sm:$0xff]
    %v259 = vld [vmem:[%s255 + $0x18] sm:$0xff]
    %v260 = vmul.f32 %v92, %v256
    %v261 = vmul.f32 %v93, %v257
    %v262 = vmul.f32 %v94, %v258
    %v263 = vmul.f32 %v95, %v259
    %v264 = vadd.f32 %v251, %v260
    %v265 = vadd.f32 %v252, %v261
    %v266 = vadd.f32 %v253, %v262
    %v267 = vadd.f32 %v254, %v263
    %v268 = vadd.f32 %v101, %v264
    %v269 = vadd.f32 %v106, %v265
    %v270 = vadd.f32 %v111, %v266
    %v271 = vadd.f32 %v116, %v267
    %s272 = scalar_lea.vmem %s2, 384
    %v273 = vld [vmem:[%s272] sm:$0xff]
    %v274 = vld [vmem:[%s272 + $0x8] sm:$0xff]
    %v275 = vld [vmem:[%s272 + $0x10] sm:$0xff]
    %v276 = vld [vmem:[%s272 + $0x18] sm:$0xff]
    %v277 = vmul.f32 %v84, %v273
    %v278 = vmul.f32 %v85, %v274
    %v279 = vmul.f32 %v86, %v275
    %v280 = vmul.f32 %v87, %v276
    %s281 = scalar_lea.vmem %s2, 416
    %v282 = vld [vmem:[%s281] sm:$0xff]
    %v283 = vld [vmem:[%s281 + $0x8] sm:$0xff]
    %v284 = vld [vmem:[%s281 + $0x10] sm:$0xff]
    %v285 = vld [vmem:[%s281 + $0x18] sm:$0xff]
    %v286 = vmul.f32 %v88, %v282
    %v287 = vmul.f32 %v89, %v283
    %v288 = vmul.f32 %v90, %v284
    %v289 = vmul.f32 %v91, %v285
    %v290 = vadd.f32 %v277, %v286
    %v291 = vadd.f32 %v278, %v287
    %v292 = vadd.f32 %v279, %v288
    %v293 = vadd.f32 %v280, %v289
    %s294 = scalar_lea.vmem %s2, 448
    %v295 = vld [vmem:[%s294] sm:$0xff]
    %v296 = vld [vmem:[%s294 + $0x8] sm:$0xff]
    %v297 = vld [vmem:[%s294 + $0x10] sm:$0xff]
    %v298 = vld [vmem:[%s294 + $0x18] sm:$0xff]
    %v299 = vmul.f32 %v92, %v295
    %v300 = vmul.f32 %v93, %v296
    %v301 = vmul.f32 %v94, %v297
    %v302 = vmul.f32 %v95, %v298
    %v303 = vadd.f32 %v290, %v299
    %v304 = vadd.f32 %v291, %v300
    %v305 = vadd.f32 %v292, %v301
    %v306 = vadd.f32 %v293, %v302
    %v307 = vadd.f32 %v101, %v303
    %v308 = vadd.f32 %v106, %v304
    %v309 = vadd.f32 %v111, %v305
    %v310 = vadd.f32 %v116, %v306
    %v311 = vadd.f32 %v151, %v190
    %v312 = vadd.f32 %v152, %v191
    %v313 = vadd.f32 %v153, %v192
    %v314 = vadd.f32 %v154, %v193
    %v315 = vadd.f32 %v311, %v229
    %v316 = vadd.f32 %v312, %v230
    %v317 = vadd.f32 %v313, %v231
    %v318 = vadd.f32 %v314, %v232
    %v319 = vadd.f32 %v315, %v268
    %v320 = vadd.f32 %v316, %v269
    %v321 = vadd.f32 %v317, %v270
    %v322 = vadd.f32 %v318, %v271
    %v323 = vadd.f32 %v319, %v307
    %v324 = vadd.f32 %v320, %v308
    %v325 = vadd.f32 %v321, %v309
    %v326 = vadd.f32 %v322, %v310
    %v327 = vmul.f32 %v323, 0.2
    %v328 = vmul.f32 %v324, 0.2
    %v329 = vmul.f32 %v325, 0.2
    %v330 = vmul.f32 %v326, 0.2
    %v331 = vsub.f32 %v151, %v327
    %v332 = vsub.f32 %v152, %v328
    %v333 = vsub.f32 %v153, %v329
    %v334 = vsub.f32 %v154, %v330
    %v335 = vmul.f32 %v331, %v331
    %v336 = vmul.f32 %v332, %v332
    %v337 = vmul.f32 %v333, %v333
    %v338 = vmul.f32 %v334, %v334
    %v339 = vsub.f32 %v190, %v327
    %v340 = vsub.f32 %v191, %v328
    %v341 = vsub.f32 %v192, %v329
    %v342 = vsub.f32 %v193, %v330
    %v343 = vmul.f32 %v339, %v339
    %v344 = vmul.f32 %v340, %v340
    %v345 = vmul.f32 %v341, %v341
    %v346 = vmul.f32 %v342, %v342
    %v347 = vadd.f32 %v335, %v343
    %v348 = vadd.f32 %v336, %v344
    %v349 = vadd.f32 %v337, %v345
    %v350 = vadd.f32 %v338, %v346
    %v351 = vsub.f32 %v229, %v327
    %v352 = vsub.f32 %v230, %v328
    %v353 = vsub.f32 %v231, %v329
    %v354 = vsub.f32 %v232, %v330
    %v355 = vmul.f32 %v351, %v351
    %v356 = vmul.f32 %v352, %v352
    %v357 = vmul.f32 %v353, %v353
    %v358 = vmul.f32 %v354, %v354
    %v359 = vadd.f32 %v347, %v355
    %v360 = vadd.f32 %v348, %v356
    %v361 = vadd.f32 %v349, %v357
    %v362 = vadd.f32 %v350, %v358
    %v363 = vsub.f32 %v268, %v327
    %v364 = vsub.f32 %v269, %v328
    %v365 = vsub.f32 %v270, %v329
    %v366 = vsub.f32 %v271, %v330
    %v367 = vmul.f32 %v363, %v363
    %v368 = vmul.f32 %v364, %v364
    %v369 = vmul.f32 %v365, %v365
    %v370 = vmul.f32 %v366, %v366
    %v371 = vadd.f32 %v359, %v367
    %v372 = vadd.f32 %v360, %v368
    %v373 = vadd.f32 %v361, %v369
    %v374 = vadd.f32 %v362, %v370
    %v375 = vsub.f32 %v307, %v327
    %v376 = vsub.f32 %v308, %v328
    %v377 = vsub.f32 %v309, %v329
    %v378 = vsub.f32 %v310, %v330
    %v379 = vmul.f32 %v375, %v375
    %v380 = vmul.f32 %v376, %v376
    %v381 = vmul.f32 %v377, %v377
    %v382 = vmul.f32 %v378, %v378
    %v383 = vadd.f32 %v371, %v379
    %v384 = vadd.f32 %v372, %v380
    %v385 = vadd.f32 %v373, %v381
    %v386 = vadd.f32 %v374, %v382
    %v387 = vmul.f32 %v383, 0.25
    %v388 = vmul.f32 %v384, 0.25
    %v389 = vmul.f32 %v385, 0.25
    %v390 = vmul.f32 %v386, 0.25
    %v391 = vrsqrt.pop %v387
    %v392 = vmul.f32 %v387, %v391
    %vm393 = vcmp.eq.f32.partialorder %v387, inf
    %v394 = vsel %vm393, %v387, %v392
    %vm395 = vcmp.eq.f32.partialorder %v387, 0.0
    %v396 = vand.u32 %v387, 2147483648
    %v397 = vsel %vm395, %v396, %v394
    %v398 = vrsqrt.pop %v388
    %v399 = vmul.f32 %v388, %v398
    %vm400 = vcmp.eq.f32.partialorder %v388, inf
    %v401 = vsel %vm400, %v388, %v399
    %vm402 = vcmp.eq.f32.partialorder %v388, 0.0
    %v403 = vand.u32 %v388, 2147483648
    %v404 = vsel %vm402, %v403, %v401
    %v405 = vrsqrt.pop %v389
    %v406 = vmul.f32 %v389, %v405
    %vm407 = vcmp.eq.f32.partialorder %v389, inf
    %v408 = vsel %vm407, %v389, %v406
    %vm409 = vcmp.eq.f32.partialorder %v389, 0.0
    %v410 = vand.u32 %v389, 2147483648
    %v411 = vsel %vm409, %v410, %v408
    %v412 = vrsqrt.pop %v390
    %v413 = vmul.f32 %v390, %v412
    %vm414 = vcmp.eq.f32.partialorder %v390, inf
    %v415 = vsel %vm414, %v390, %v413
    %vm416 = vcmp.eq.f32.partialorder %v390, 0.0
    %v417 = vand.u32 %v390, 2147483648
    %v418 = vsel %vm416, %v417, %v415
    %v419 = vsub.f32 %v327, 7.2
    %v420 = vsub.f32 %v328, 7.2
    %v421 = vsub.f32 %v329, 7.2
    %v422 = vsub.f32 %v330, 7.2
    %423 = vst.msk [vmem:[%s4] sm:$0xff] %vm96, %v419
    %424 = vst.msk [vmem:[%s4 + $0x8] sm:$0xff] %vm96, %v420
    %425 = vst.msk [vmem:[%s4 + $0x10] sm:$0xff] %vm96, %v421
    %426 = vst.msk [vmem:[%s4 + $0x18] sm:$0xff] %vm96, %v422
    %427 = vst.msk [vmem:[%s5] sm:$0xff] %vm96, %v397
    %428 = vst.msk [vmem:[%s5 + $0x8] sm:$0xff] %vm96, %v404
    %429 = vst.msk [vmem:[%s5 + $0x10] sm:$0xff] %vm96, %v411
    %430 = vst.msk [vmem:[%s5 + $0x18] sm:$0xff] %vm96, %v418
    %v431 = vsub.f32 %v151, 7.2
    %v432 = vsub.f32 %v152, 7.2
    %v433 = vsub.f32 %v153, 7.2
    %v434 = vsub.f32 %v154, 7.2
    %v435 = vsub.f32 %v190, 7.2
    %v436 = vsub.f32 %v191, 7.2
    %v437 = vsub.f32 %v192, 7.2
    %v438 = vsub.f32 %v193, 7.2
    %v439 = vsub.f32 %v229, 7.2
    %v440 = vsub.f32 %v230, 7.2
    %v441 = vsub.f32 %v231, 7.2
    %v442 = vsub.f32 %v232, 7.2
    %v443 = vsub.f32 %v268, 7.2
    %v444 = vsub.f32 %v269, 7.2
    %v445 = vsub.f32 %v270, 7.2
    %v446 = vsub.f32 %v271, 7.2
    %v447 = vsub.f32 %v307, 7.2
    %v448 = vsub.f32 %v308, 7.2
    %v449 = vsub.f32 %v309, 7.2
    %v450 = vsub.f32 %v310, 7.2
    %455 = vrot.lane.b32.xlu0 %v435, 16
    %v456 = vpop.permute.xlu0 %455
    %457 = vrot.lane.b32.xlu0 %v436, 16
    %v458 = vpop.permute.xlu0 %457
    %459 = vrot.lane.b32.xlu0 %v437, 16
    %v460 = vpop.permute.xlu0 %459
    %461 = vrot.lane.b32.xlu0 %v438, 16
    %v462 = vpop.permute.xlu0 %461
    %471 = vrot.lane.b32.xlu0 %v439, 32
    %v472 = vpop.permute.xlu0 %471
    %473 = vrot.lane.b32.xlu0 %v440, 32
    %v474 = vpop.permute.xlu0 %473
    %475 = vrot.lane.b32.xlu0 %v441, 32
    %v476 = vpop.permute.xlu0 %475
    %477 = vrot.lane.b32.xlu0 %v442, 32
    %v478 = vpop.permute.xlu0 %477
    %487 = vrot.lane.b32.xlu0 %v443, 48
    %v488 = vpop.permute.xlu0 %487
    %489 = vrot.lane.b32.xlu0 %v444, 48
    %v490 = vpop.permute.xlu0 %489
    %491 = vrot.lane.b32.xlu0 %v445, 48
    %v492 = vpop.permute.xlu0 %491
    %493 = vrot.lane.b32.xlu0 %v446, 48
    %v494 = vpop.permute.xlu0 %493
    %503 = vrot.lane.b32.xlu0 %v447, 64
    %v504 = vpop.permute.xlu0 %503
    %505 = vrot.lane.b32.xlu0 %v448, 64
    %v506 = vpop.permute.xlu0 %505
    %507 = vrot.lane.b32.xlu0 %v449, 64
    %v508 = vpop.permute.xlu0 %507
    %509 = vrot.lane.b32.xlu0 %v450, 64
    %v510 = vpop.permute.xlu0 %509
    %v515 = vsel %vm96, %v431, %v456
    %v516 = vsel %vm96, %v432, %v458
    %v517 = vsel %vm96, %v433, %v460
    %v518 = vsel %vm96, %v434, %v462
    %vm519 = vcmask 261120
    %v520 = vsel %vm519, %v515, %v472
    %v521 = vsel %vm519, %v516, %v474
    %v522 = vsel %vm519, %v517, %v476
    %v523 = vsel %vm519, %v518, %v478
    %vm524 = vcmask 392192
    %v525 = vsel %vm524, %v520, %v488
    %v526 = vsel %vm524, %v521, %v490
    %v527 = vsel %vm524, %v522, %v492
    %v528 = vsel %vm524, %v523, %v494
    %vm529 = vcmask 523264
    %v530 = vsel %vm529, %v525, %v504
    %v531 = vsel %vm529, %v526, %v506
    %v532 = vsel %vm529, %v527, %v508
    %v533 = vsel %vm529, %v528, %v510
    %v534 = vld [vmem:[#allocation2] sm:$0xff]
    %v535 = vld [vmem:[%s0] sm:$0xff]
    %v537 = vsel %vm519, %v535, 0
    %539 = vmatprep.subr.mxu0 0.0
    %540 = vmatpush1.msra.mxu0 %v530
    %541 = vmatprep.subr.mxu0 0.0
    %542 = vmatpush1.msra.mxu0 %v531
    %543 = vmatprep.subr.mxu0 0.0
    %544 = vmatpush1.msra.mxu0 %v532
    %545 = vmatprep.subr.mxu0 0.0
    %546 = vmatpush1.msra.mxu0 %v533
    %547 = vmatprep.subr.mxu0 0.0
    %548 = vmatpush1.msra.mxu0 0.0
    %549 = vmatprep.subr.mxu0 0.0
    %550 = vmatpush1.msra.mxu0 0.0
    %551 = vmatprep.subr.mxu0 0.0
    %552 = vmatpush1.msra.mxu0 0.0
    %553 = vmatprep.subr.mxu0 0.0
    %554 = vmatpush1.msra.mxu0 0.0
    %555 = vmatprep.subr.mxu0 0.0
    %556 = vmatpush1.msra.mxu0 0.0
    %557 = vmatprep.subr.mxu0 0.0
    %558 = vmatpush1.msra.mxu0 0.0
    %559 = vmatprep.subr.mxu0 0.0
    %560 = vmatpush1.msra.mxu0 0.0
    %561 = vmatprep.subr.mxu0 0.0
    %562 = vmatpush1.msra.mxu0 0.0
    %563 = vmatprep.subr.mxu0 0.0
    %564 = vmatpush1.msra.mxu0 0.0
    %565 = vmatprep.subr.mxu0 0.0
    %566 = vmatpush1.msra.mxu0 0.0
    %567 = vmatprep.subr.mxu0 0.0
    %568 = vmatpush1.msra.mxu0 0.0
    %569 = vmatprep.subr.mxu0 0.0
    %570 = vmatpush1.msra.mxu0 0.0
    %571 = vmatprep.subr.mxu0 0.0
    %572 = vmatpush1.msra.mxu0 0.0
    %573 = vmatprep.subr.mxu0 0.0
    %574 = vmatpush1.msra.mxu0 0.0
    %575 = vmatprep.subr.mxu0 0.0
    %576 = vmatpush1.msra.mxu0 0.0
    %577 = vmatprep.subr.mxu0 0.0
    %578 = vmatpush1.msra.mxu0 0.0
    %579 = vmatprep.subr.mxu0 0.0
    %580 = vmatpush1.msra.mxu0 0.0
    %581 = vmatprep.subr.mxu0 0.0
    %582 = vmatpush1.msra.mxu0 0.0
    %583 = vmatprep.subr.mxu0 0.0
    %584 = vmatpush1.msra.mxu0 0.0
    %585 = vmatprep.subr.mxu0 0.0
    %586 = vmatpush1.msra.mxu0 0.0
    %587 = vmatprep.subr.mxu0 0.0
    %588 = vmatpush1.msra.mxu0 0.0
    %589 = vmatprep.subr.mxu0 0.0
    %590 = vmatpush1.msra.mxu0 0.0
    %591 = vmatprep.subr.mxu0 0.0
    %592 = vmatpush1.msra.mxu0 0.0
    %593 = vmatprep.subr.mxu0 0.0
    %594 = vmatpush1.msra.mxu0 0.0
    %595 = vmatprep.subr.mxu0 0.0
    %596 = vmatpush1.msra.mxu0 0.0
    %597 = vmatprep.subr.mxu0 0.0
    %598 = vmatpush1.msra.mxu0 0.0
    %599 = vmatprep.subr.mxu0 0.0
    %600 = vmatpush1.msra.mxu0 0.0
    %601 = vmatprep.subr.mxu0 0.0
    %602 = vmatpush1.msra.mxu0 0.0
    %603 = vmatprep.mubr.f32.mxu0 0.0
    %604 = vmatmul.mubr.f32.gmra.mrb[0].mxu0 %v537
    %v605 = vpop.f32.mrb[0].mxu0
    %v606 = vadd.f32 0.0, %v605
    %v607 = vpop.f32.mrb[0].mxu0
    %608 = vdwg.mxu0
    %v609 = vadd.f32 %v534, %v606
    %vm610 = vcmask 654336
    %611 = vst.msk [vmem:[#allocation2] sm:$0xff] %vm610, %v609
    // Predicated region
    $region18: #{tpu_custom_call.1} parent=1 // pred_check
      %p612 = pneg %p18
    $region19: #{tpu_custom_call.1} parent=1 // pred_check_branch
      %614 = sbr.rel (%p612) target = $region21
    $region20: #{tpu_custom_call.1} parent=1 // pred_region
      %v615 = vld [vmem:[#allocation2] sm:$0xff]
      %616 = vst.msk [vmem:[#allocation3] sm:$0xff] %vm96, %v615
      %v617 = vld [vmem:[#allocation2] sm:$0xff]
      %619 = vrot.lane.b32.xlu0 %v617, 112
      %v620 = vpop.permute.xlu0 %619
      %s622 = scalar_lea.vmem [#allocation3], 8
      %623 = vst.msk [vmem:[%s622] sm:$0xff] %vm96, %v620
      %v624 = vld [vmem:[#allocation2] sm:$0xff]
      %626 = vrot.lane.b32.xlu0 %v624, 96
      %v627 = vpop.permute.xlu0 %626
      %s629 = scalar_lea.vmem [#allocation3], 16
      %630 = vst.msk [vmem:[%s629] sm:$0xff] %vm96, %v627
      %v631 = vld [vmem:[#allocation2] sm:$0xff]
      %633 = vrot.lane.b32.xlu0 %v631, 80
      %v634 = vpop.permute.xlu0 %633
      %s636 = scalar_lea.vmem [#allocation3], 24
      %637 = vst.msk [vmem:[%s636] sm:$0xff] %vm96, %v634
      %v638 = vld [vmem:[#allocation2] sm:$0xff]
      %640 = vrot.lane.b32.xlu0 %v638, 64
      %v641 = vpop.permute.xlu0 %640
      %s643 = scalar_lea.vmem [#allocation3], 32
      %644 = vst.msk [vmem:[%s643] sm:$0xff] %vm96, %v641
    $region21: #{tpu_custom_call.1} parent=1 // pred_fallthru
      _
    // Predicated region
    $region22: #{tpu_custom_call.1} parent=1 // pred_check
      _
    $region23: #{tpu_custom_call.1} parent=1 // pred_check_branch
      %646 = sbr.rel (0) target = $region25
    $region24: #{tpu_custom_call.1} parent=1 // pred_region
      %s648 = ssub.s32 640, 640
      %649 = vsyncadd [#allocation4], %s648
      %s650 = sshll.u32 [#allocation3], 4
      %s651 = int_to_ptr.vmem [resolvable:$true] %s650
      %656 = dma.vmem_to_hbm [thread:$0]  %s651, 640, %s3, [#allocation4], 128, 128, 8
    $region25: #{tpu_custom_call.1} parent=1 // pred_fallthru
      _
    // Predicated region
    $region26: #{tpu_custom_call.1} parent=1 // pred_check
      _
    $region27: #{tpu_custom_call.1} parent=1 // pred_check_branch
      %658 = sbr.rel (0) target = $region29
    $region28: #{tpu_custom_call.1} parent=1 // pred_region
      _
    $region29: #{tpu_custom_call.1} parent=1 // pred_fallthru
      _
    // Predicated region
    $region30: #{tpu_custom_call.1} parent=1 // pred_check
      _
    $region31: #{tpu_custom_call.1} parent=1 // pred_check_branch
      %660 = sbr.rel (0) target = $region33
    $region32: #{tpu_custom_call.1} parent=1 // pred_region
      _
    $region33: #{tpu_custom_call.1} parent=1 // pred_fallthru
      _
    // Predicated region
    $region34: #{tpu_custom_call.1} parent=1 // pred_check
      _
    $region35: #{tpu_custom_call.1} parent=1 // pred_check_branch
      %662 = sbr.rel (0) target = $region37
    $region36: #{tpu_custom_call.1} parent=1 // pred_region
      %663 = dma.done [#allocation4], 640
    $region37: #{tpu_custom_call.1} parent=1 // pred_fallthru
      _
    // Predicated region
    $region38: #{tpu_custom_call.1} parent=1 // pred_check
      _
    $region39: #{tpu_custom_call.1} parent=1 // pred_check_branch
      %665 = sbr.rel (0) target = $region41
    $region40: #{tpu_custom_call.1} parent=1 // pred_region
      _
    $region41: #{tpu_custom_call.1} parent=1 // pred_fallthru
      _
    // Predicated region
    $region42: #{tpu_custom_call.1} parent=1 // pred_check
      _
    $region43: #{tpu_custom_call.1} parent=1 // pred_check_branch
      %667 = sbr.rel (0) target = $region45
    $region44: #{tpu_custom_call.1} parent=1 // pred_region
      _
    $region45: #{tpu_custom_call.1} parent=1 // pred_fallthru
      _
    %668 = vsyncpa [#allocation4], 1

</llo_original>
